<compile_context>
chip_gen: v7x
topology: tpu7x:2x2x1
jax: 0.10.0
libtpu: 0.0.40
codegen_flags: <defaults>
</compile_context>

<pallas_src>
import numpy as np

import jax
import jax.numpy as jnp
from jax.experimental import pallas as pl
from jax.experimental.pallas import tpu as pltpu


# --------------------------------------------------------------------------- #
# Kernels
# --------------------------------------------------------------------------- #
def _upsample_fold_kernel(g_ref, x_ref, o_ref):
    # g_ref: (m*W, m*s_h*Wo) constant one-hot selection matrix (fetched once).
    # x_ref: (TR, m*W)        folded input rows, native dtype (lane-dense).
    # o_ref: (TR, m*s_h*Wo)   folded output rows (lane-dense).
    x = x_ref[...].astype(g_ref.dtype)          # in-kernel cast: no extra HBM pass
    y = jnp.dot(x, g_ref[...], preferred_element_type=jnp.float32)
    o_ref[...] = y.astype(o_ref.dtype)


def _upsample_wtile_kernel(g_ref, x_ref, o_ref):
    # g_ref: (W_t, s_w*W_t)       per-width-tile selection matrix (fetched once).
    # x_ref: (TR, W_t)            one input row per presented row, native dtype.
    # o_ref: (TR, s_h, s_w*W_t)   height replication done by a cheap sublane
    #                             broadcast instead of s_h x more MXU work.
    x = x_ref[...].astype(g_ref.dtype)
    y = jnp.dot(x, g_ref[...], preferred_element_type=jnp.float32)   # (TR, s_w*W_t)
    o_ref[...] = jnp.broadcast_to(y[:, None, :], o_ref.shape).astype(o_ref.dtype)


# --------------------------------------------------------------------------- #
# Hardware / tiling heuristics
# --------------------------------------------------------------------------- #
def _resolve_output_size(H, W, size, scale_factor):
    if size is not None:
        if isinstance(size, (tuple, list)):
            return int(size[0]), int(size[1])
        return int(size), int(size)
    if isinstance(scale_factor, (tuple, list)):
        sh, sw = scale_factor
    else:
        sh = sw = scale_factor
    # floor(), matching PyTorch 'nearest'
    return int(H * sh), int(W * sw)


def _sublane_tile(dtype):
    """Native sublane tile for a dtype: 8 (32-bit), 16 (16-bit), 32 (8-bit)."""
    return max(8, 32 // max(1, jnp.dtype(dtype).itemsize))


def _tpu_budgets():
    """(vmem_limit_bytes, target_block_bytes, mxu_k) tuned per generation."""
    vmem_cap = 64 << 20            # assume v7x (smallest VMEM) if query fails
    try:
        info = pltpu.get_tpu_info()
        vmem_cap = int(getattr(info, "vmem_capacity_bytes", vmem_cap))
    except Exception:
        pass
    mxu_k = 256                    # v6e / v7x MXU contraction granularity
    try:
        kind = jax.devices()[0].device_kind.lower()
        if "v2" in kind or "v3" in kind or "v4" in kind or "v5" in kind:
            mxu_k = 128
    except Exception:
        pass
    if vmem_cap >= (96 << 20):     # v5e / v6e: 128 MiB physical VMEM
        return 64 << 20, 6 << 20, mxu_k
    return 48 << 20, 4 << 20, mxu_k   # v7x: 64 MiB physical, faster HBM


def _pick_fold(BC, H, W, Wo, s_h, g_itemsize, sub, mxu_k,
               target_lane=512, g_cap_bytes=2 << 20):
    """Input rows folded per presented row (Path A).

    Priorities: G fits g_cap; output lane width reaches ~target_lane
    (unmasked wide stores); total presented rows stay >= 2*sub so the grid has
    >= 2 steps (keeps both v7x TensorCores busy); mild preference for the MXU
    contraction granularity (256 on v6e/v7x, 128 on v5e); smaller fold on ties.
    Returns 0 when even m=1 exceeds g_cap (caller tries width tiling).
    """
    candidates = []
    for m in range(1, H + 1):
        if H % m != 0:
            continue
        if (m * W) * (m * s_h * Wo) * g_itemsize > g_cap_bytes:
            break
        candidates.append(m)
    if not candidates:
        return 0

    def score(m):
        in_lane = m * W
        out_lane = m * s_h * Wo
        rows = BC * (H // m)
        return (min(out_lane, target_lane),   # lane density first (biggest lever)
                rows >= 2 * sub,              # keep >=2 grid steps possible
                in_lane % mxu_k == 0,         # MXU K alignment
                in_lane % 128 == 0,
                -m)                           # smaller fold on ties
    return max(candidates, key=score)


def _pick_width_tile(W, s_w, g_itemsize, g_cap_bytes):
    """Largest multiple-of-128 width tile whose G_w = (W_t, s_w*W_t) fits cap."""
    wt = max(128, (W // 128) * 128)
    while wt > 128 and wt * (s_w * wt) * g_itemsize > g_cap_bytes:
        wt -= 128
    return wt


def _pick_rows_per_block(total_rows, traffic_per_row, vmem_per_row, fixed_vmem,
                         sub, target_block_bytes, vmem_budget):
    """Presented rows per grid step.

    * multiple of the dtype sublane tile `sub`
    * roughly target_block_bytes of (input+output) traffic per step
    * always >= 2 grid steps when total_rows >= 2*sub (both v7x TCs busy)
    * double-buffered VMEM working set stays within vmem_budget
    """
    traffic_per_row = max(int(traffic_per_row), 1)
    tr = min(total_rows, max(sub, int(target_block_bytes) // traffic_per_row))
    tr = max(sub, (tr // sub) * sub)
    if tr >= total_rows and total_rows >= 2 * sub:
        half = (total_rows + 1) // 2
        tr = ((half + sub - 1) // sub) * sub          # half, rounded up to sub
    while tr > sub and fixed_vmem + tr * vmem_per_row > vmem_budget:
        tr -= sub
    return int(max(1, min(tr, total_rows)))


# --------------------------------------------------------------------------- #
# pallas_call wrapper (with single-buffered-G fallback)
# --------------------------------------------------------------------------- #
def _call_with_g_fallback(kernel, G, x2, out_shape, grid, g_spec_parts,
                          x_spec, o_spec, dim_sem, vmem_limit, cost):
    def run(single_buffer_g):
        g_shape, g_map = g_spec_parts
        if single_buffer_g:
            # Constant index_map -> G is fetched exactly once; one VMEM buffer
            # is enough (saves up to the whole G footprint vs 2-deep pipeline).
            g_spec = pl.BlockSpec(g_shape, g_map, pipeline_mode=pl.Buffered(1))
        else:
            g_spec = pl.BlockSpec(g_shape, g_map)
        return pl.pallas_call(
            kernel,
            out_shape=out_shape,
            grid_spec=pltpu.PrefetchScalarGridSpec(
                num_scalar_prefetch=0,
                grid=grid,
                in_specs=[g_spec, x_spec],
                out_specs=o_spec),
            compiler_params=pltpu.CompilerParams(
                dimension_semantics=dim_sem,
                vmem_limit_bytes=vmem_limit),
            cost_estimate=cost,
        )(G, x2)

    try:
        return run(True)
    except Exception:
        # TODO(synk): pl.Buffered(1) pipeline_mode unsupported on this
        # jax/Mosaic build; fall back to the default double-buffered G.
        return run(False)


# --------------------------------------------------------------------------- #
# Width-tiled path (wide feature maps, integer width scale)
# --------------------------------------------------------------------------- #
def _upsample_width_tiled(x, B, C, H, W, Ho, Wo, s_h, xd, cdtype, sub,
                          target_block, vmem_limit, vmem_budget, g_cap_bytes):
    s_w = Wo // W
    g_item = cdtype.itemsize
    W_t = _pick_width_tile(W, s_w, g_item, g_cap_bytes)
    n_wt = pl.cdiv(W, W_t)
    out_w = s_w * W_t
    R = B * C * H

    # Per-tile selection matrix: output local column u sources input local
    # column u // s_w (nearest with integer width scale is width-tile-local).
    u = np.arange(out_w)
    g_np = (np.arange(W_t)[:, None] == (u // s_w)[None, :]).astype(np.float32)
    G = jnp.asarray(g_np, dtype=cdtype)

    x2 = x.reshape(R, W)                     # native dtype, pure reshape

    traffic_per_row = (W_t + s_h * out_w) * xd.itemsize
    vmem_per_row = (2 * W_t * xd.itemsize + W_t * g_item
                    + 2 * s_h * out_w * xd.itemsize + out_w * 4)
    g_vmem = W_t * out_w * g_item
    tr = _pick_rows_per_block(R, traffic_per_row, vmem_per_row, g_vmem,
                              sub, target_block, vmem_budget)
    grid = (pl.cdiv(R, tr), n_wt)

    cost = pl.CostEstimate(
        flops=int(2 * R * n_wt * W_t * out_w),
        transcendentals=0,
        bytes_accessed=int(R * W * xd.itemsize + W_t * out_w * g_item
                           + R * s_h * Wo * xd.itemsize))

    out_shape = jax.ShapeDtypeStruct((R, s_h, Wo), xd)
    x_spec = pl.BlockSpec((tr, W_t), lambda r, wt: (r, wt))
    o_spec = pl.BlockSpec((tr, s_h, out_w), lambda r, wt: (r, 0, wt))

    out3 = _call_with_g_fallback(
        _upsample_wtile_kernel, G, x2, out_shape, grid,
        ((W_t, out_w), lambda r, wt: (0, 0)),
        x_spec, o_spec, ("parallel", "parallel"), vmem_limit, cost)
    return out3.reshape(B, C, Ho, Wo)


# --------------------------------------------------------------------------- #
# Wrapper (forward pass of `Interpolate`)
# --------------------------------------------------------------------------- #
def interpolate_nearest(x, size=None, scale_factor=None, g_cap_bytes=2 << 20):
    """Pallas TPU equivalent of F.interpolate(x, size, scale_factor, 'nearest').

    x: (B, C, H, W). Output height must be an integer multiple of H (always
    true for the module's integer scale_factor); output width is arbitrary.
    """
    if size is None and scale_factor is None:
        raise ValueError("either `size` or `scale_factor` must be given")

    B, C, H, W = x.shape
    Ho, Wo = _resolve_output_size(H, W, size, scale_factor)

    # TODO(synk): non-integer height scaling (Ho % H != 0) would need a
    # per-output-row selection matrix; not needed for this module's config.
    if Ho % H != 0:
        raise NotImplementedError("output height must be an integer multiple of H")
    s_h = Ho // H

    xd = jnp.dtype(x.dtype)
    if xd in (jnp.dtype(jnp.float32), jnp.dtype(jnp.bfloat16)):
        cdtype = xd
    else:
        cdtype = jnp.dtype(jnp.float32)     # f16 / ints: exact via f32 compute
    g_item = cdtype.itemsize
    sub = _sublane_tile(xd)

    vmem_limit, target_block, mxu_k = _tpu_budgets()
    vmem_budget = int(vmem_limit * 0.85)

    BC = B * C
    m = _pick_fold(BC, H, W, Wo, s_h, g_item, sub, mxu_k, g_cap_bytes=g_cap_bytes)

    if m == 0:
        # Even the unfolded G would blow the VMEM cap: tile the width instead
        # (valid whenever the width scale is an integer -> mapping is tile-local).
        if Wo % W == 0 and W >= 128:
            try:
                return _upsample_width_tiled(x, B, C, H, W, Ho, Wo, s_h, xd,
                                             cdtype, sub, target_block,
                                             vmem_limit, vmem_budget, g_cap_bytes)
            except Exception:
                m = 1   # fall back to one dense G below
        else:
            # TODO(synk): very wide W with non-integer width scale would need a
            # per-tile selection matrix; fall back to one dense (oversized) G.
            m = 1

    # ---------------- Path A: folded, single dense selection matrix ----------
    total_rows = BC * (H // m)              # presented rows (m input rows each)
    in_lane = m * W                         # presented input lane width
    out_lane = m * s_h * Wo                 # presented output lane width

    # Constant selection matrix (host-side, DMA'd once per launch):
    #   folded-output column q = (j*s_h + a)*Wo + v  sources
    #   folded-input  column k = j*W + src_w[v],  src_w[v] = (v*W)//Wo.
    src_w = (np.arange(Wo) * W) // Wo
    k_idx = np.arange(in_lane)
    q_idx = np.arange(out_lane)
    j_k, w_k = k_idx // W, k_idx % W
    j_q = q_idx // (s_h * Wo)
    v_q = q_idx % Wo
    g_np = ((j_k[:, None] == j_q[None, :]) &
            (w_k[:, None] == src_w[v_q][None, :])).astype(np.float32)
    G = jnp.asarray(g_np, dtype=cdtype)

    # Lane-dense 2-D presentation — pure row-major reshapes, native dtype:
    #   x2[t, j*W + w]             = x[b, c, g*m + j, w],  t = (b*C+c)*(H//m) + g
    #   out2[t, (j*s_h+a)*Wo + v]  = out[b, c, (g*m+j)*s_h + a, v]
    x2 = x.reshape(total_rows, in_lane)

    traffic_per_row = (in_lane + out_lane) * xd.itemsize
    vmem_per_row = (2 * in_lane * xd.itemsize + in_lane * g_item
                    + 2 * out_lane * xd.itemsize + out_lane * 4)
    g_vmem = in_lane * out_lane * g_item
    tr = _pick_rows_per_block(total_rows, traffic_per_row, vmem_per_row, g_vmem,
                              sub, target_block, vmem_budget)
    grid = (pl.cdiv(total_rows, tr),)

    cost = pl.CostEstimate(
        flops=int(2 * total_rows * in_lane * out_lane),
        transcendentals=0,
        bytes_accessed=int(total_rows * in_lane * xd.itemsize
                           + in_lane * out_lane * g_item
                           + total_rows * out_lane * xd.itemsize))

    out_shape = jax.ShapeDtypeStruct((total_rows, out_lane), xd)
    x_spec = pl.BlockSpec((tr, in_lane), lambda r: (r, 0))
    o_spec = pl.BlockSpec((tr, out_lane), lambda r: (r, 0))

    out2 = _call_with_g_fallback(
        _upsample_fold_kernel, G, x2, out_shape, grid,
        ((in_lane, out_lane), lambda r: (0, 0)),
        x_spec, o_spec, ("parallel",), vmem_limit, cost)
    return out2.reshape(B, C, Ho, Wo)


class Interpolate:
    """Mirror of the PyTorch module (mode='nearest' only)."""

    def __init__(self, size=None, scale_factor=None, mode="nearest",
                 align_corners=False):
        # TODO(synk): only mode='nearest' (the module's configured mode) is
        # implemented; align_corners is ignored for nearest, as in PyTorch.
        if mode != "nearest":
            raise NotImplementedError("only mode='nearest' is implemented")
        self.size = size
        self.scale_factor = scale_factor

    def __call__(self, x):
        return interpolate_nearest(x, size=self.size,
                                   scale_factor=self.scale_factor)


# --------------------------------------------------------------------------- #
# Reference + self-test
# --------------------------------------------------------------------------- #
def _reference_nearest(x, size=None, scale_factor=None):
    B, C, H, W = x.shape
    Ho, Wo = _resolve_output_size(H, W, size, scale_factor)
    idx_h = (jnp.arange(Ho) * H) // Ho
    idx_w = (jnp.arange(Wo) * W) // Wo
    return x[:, :, idx_h][:, :, :, idx_w]


if __name__ == "__main__":
    # Module config: Interpolate(scale_factor=2, mode='nearest')
    module = Interpolate(scale_factor=2, mode="nearest")

    key = jax.random.PRNGKey(0)
    x = jax.random.normal(key, (2, 4, 16, 16), dtype=jnp.float32)

    y = jax.block_until_ready(module(x))
    y_ref = _reference_nearest(x, scale_factor=2)
    assert y.shape == (2, 4, 32, 32), y.shape
    assert jnp.allclose(y, y_ref, atol=1e-6), "mismatch vs reference (folded path)"

    # Wider input with a small G cap to exercise the width-tiled path.
    xw = jax.random.normal(jax.random.PRNGKey(1), (1, 2, 8, 256), dtype=jnp.float32)
    yw = jax.block_until_ready(
        interpolate_nearest(xw, scale_factor=2, g_cap_bytes=256 * 1024))
    yw_ref = _reference_nearest(xw, scale_factor=2)
    assert yw.shape == (1, 2, 16, 512), yw.shape
    assert jnp.allclose(yw, yw_ref, atol=1e-6), "mismatch vs reference (width-tiled path)"

    print("KERNEL_OK")
</pallas_src>

<mosaic_0001>
module attributes {stable_mosaic.version = 11 : i64} {
  func.func @_upsample_fold_kernel(%arg0: i32, %arg1: memref<128x512xf32, #tpu.memory_space<vmem>>, %arg2: memref<8x128xf32, #tpu.memory_space<vmem>>, %arg3: memref<8x512xf32, #tpu.memory_space<vmem>>) attributes {dimension_semantics = [#tpu.dimension_semantics<parallel>], iteration_bounds = array<i64: 2>, scalar_prefetch = 0 : i64, scratch_operands = 0 : i64, tpu.core_type = #tpu.core_type<tc>, window_params = [{pipeline_mode = #tpu.pipeline_mode<synchronous>, transform_indices = @transform_0, window_bounds = array<i64: 128, 512>}, {transform_indices = @transform_1, window_bounds = array<i64: 8, 128>}, {transform_indices = @transform_2, window_bounds = array<i64: 8, 512>}]} {
    %c0 = arith.constant 0 : index
    %c0_0 = arith.constant 0 : index
    %0 = vector.load %arg2[%c0, %c0_0] : memref<8x128xf32, #tpu.memory_space<vmem>>, vector<8x128xf32>
    %c0_1 = arith.constant 0 : index
    %c0_2 = arith.constant 0 : index
    %1 = vector.load %arg1[%c0_1, %c0_2] : memref<128x512xf32, #tpu.memory_space<vmem>>, vector<128x512xf32>
    %cst = arith.constant dense<0.000000e+00> : vector<8x512xf32>
    %2 = tpu.matmul %0, %1, %cst {dimension_numbers = #tpu.dot_dimension_numbers<[1], [0], [0], [1], [0, 0, 1, 1], [], []>} : vector<8x128xf32>, vector<128x512xf32>, vector<8x512xf32> -> vector<8x512xf32>
    %c0_3 = arith.constant 0 : index
    %c0_4 = arith.constant 0 : index
    %3 = vector.load %arg3[%c0_3, %c0_4] : memref<8x512xf32, #tpu.memory_space<vmem>>, vector<8x512xf32>
    tpu.vector_store %arg3[%c0_3, %c0_4], %2 {strides = array<i32>} : memref<8x512xf32, #tpu.memory_space<vmem>>, vector<8x512xf32>,
    return
  }
  func.func @transform_0(%arg0: i32) -> (i32, i32) {
    %c0_i32 = arith.constant 0 : i32
    %c0_i32_0 = arith.constant 0 : i32
    %c0_i32_1 = arith.constant 0 : i32
    return %c0_i32, %c0_i32_0 : i32, i32
  }
  func.func @transform_1(%arg0: i32) -> (i32, i32) {
    %c0_i32 = arith.constant 0 : i32
    %c0_i32_0 = arith.constant 0 : i32
    return %arg0, %c0_i32 : i32, i32
  }
  func.func @transform_2(%arg0: i32) -> (i32, i32) {
    %c0_i32 = arith.constant 0 : i32
    %c0_i32_0 = arith.constant 0 : i32
    return %arg0, %c0_i32 : i32, i32
  }
}

module attributes {stable_mosaic.version = 11 : i64} {
  func.func @_upsample_fold_kernel(%arg0: i32, %arg1: memref<128x512xf32, #tpu.memory_space<vmem>>, %arg2: memref<8x128xf32, #tpu.memory_space<vmem>>, %arg3: memref<8x512xf32, #tpu.memory_space<vmem>>) attributes {dimension_semantics = [#tpu.dimension_semantics<parallel>], iteration_bounds = array<i64: 2>, scalar_prefetch = 0 : i64, scratch_operands = 0 : i64, tpu.core_type = #tpu.core_type<tc>, window_params = [{pipeline_mode = #tpu.pipeline_mode<synchronous>, transform_indices = @transform_0, window_bounds = array<i64: 128, 512>}, {transform_indices = @transform_1, window_bounds = array<i64: 8, 128>}, {transform_indices = @transform_2, window_bounds = array<i64: 8, 512>}]} {
    %c0 = arith.constant 0 : index
    %c0_0 = arith.constant 0 : index
    %0 = vector.load %arg2[%c0, %c0_0] : memref<8x128xf32, #tpu.memory_space<vmem>>, vector<8x128xf32>
    %c0_1 = arith.constant 0 : index
    %c0_2 = arith.constant 0 : index
    %1 = vector.load %arg1[%c0_1, %c0_2] : memref<128x512xf32, #tpu.memory_space<vmem>>, vector<128x512xf32>
    %cst = arith.constant dense<0.000000e+00> : vector<8x512xf32>
    %2 = tpu.matmul %0, %1, %cst {dimension_numbers = #tpu.dot_dimension_numbers<[1], [0], [0], [1], [0, 0, 1, 1], [], []>} : vector<8x128xf32>, vector<128x512xf32>, vector<8x512xf32> -> vector<8x512xf32>
    %c0_3 = arith.constant 0 : index
    %c0_4 = arith.constant 0 : index
    %3 = vector.load %arg3[%c0_3, %c0_4] : memref<8x512xf32, #tpu.memory_space<vmem>>, vector<8x512xf32>
    tpu.vector_store %arg3[%c0_3, %c0_4], %2 {strides = array<i32>} : memref<8x512xf32, #tpu.memory_space<vmem>>, vector<8x512xf32>,
    return
  }
  func.func @transform_0(%arg0: i32) -> (i32, i32) {
    %c0_i32 = arith.constant 0 : i32
    %c0_i32_0 = arith.constant 0 : i32
    %c0_i32_1 = arith.constant 0 : i32
    return %c0_i32, %c0_i32_0 : i32, i32
  }
  func.func @transform_1(%arg0: i32) -> (i32, i32) {
    %c0_i32 = arith.constant 0 : i32
    %c0_i32_0 = arith.constant 0 : i32
    return %arg0, %c0_i32 : i32, i32
  }
  func.func @transform_2(%arg0: i32) -> (i32, i32) {
    %c0_i32 = arith.constant 0 : i32
    %c0_i32_0 = arith.constant 0 : i32
    return %arg0, %c0_i32 : i32, i32
  }
}

</mosaic_0001>

<llo_original>
// kernel: tpu_custom_call.1
$region0: #{tpu_custom_call.1}
  #allocation0 [shape = 'u32[]', space=smem, size = 0x4, offset = 0x4, fixed_abs, tag = 'smem constant byte address 0x4 - core index']
  #allocation1 [shape = 'u32[144,128]{1,0:T(1,128)}', space=vmem, size = 0x12000, scoped, tag = 'internal scratch']
  %s0 = inlined_call_operand.hbm [shape: f32[128,512], index: 0, kind: input, shape index: {}]
  %s1 = inlined_call_operand.hbm [shape: f32[16,128], index: 1, kind: input, shape index: {}]
  %s2 = inlined_call_operand.hbm [shape: f32[16,512], index: 2, kind: output, shape index: {}]
  %s3 = sld [smem:[#allocation0]]
  $region49: #{tpu_custom_call.1} parent=0
    _
  %s5 = ssub.s32 1, %s3
  %s6 = scalar_select 0, %s5, %s3
  $region1: #{tpu_custom_call.1} parent=0
    #allocation2 [shape = 'u8[262144]{0}', space=vmem, size = 0x40000, scoped, tag = 'input window, operand 0, single buffered']
    #allocation3 [shape = 's32[2]{0}', space=sflag, size = 0x8, scoped, tag = 'scoped memory for tpu_custom_call.1']
    #allocation4 [shape = 's32[2]{0}', space=sflag, size = 0x8, scoped, tag = 'scoped memory for tpu_custom_call.1']
    #allocation5 [shape = 'u8[8192]{0}', space=vmem, size = 0x2000, scoped, tag = 'input window, operand 1']
    #allocation6 [shape = 's32[2]{0}', space=sflag, size = 0x8, scoped, tag = 'scoped memory for tpu_custom_call.1']
    #allocation7 [shape = 'u8[32768]{0}', space=vmem, size = 0x8000, scoped, tag = 'output window, operand 0']
    %7 = vsyncpa [#allocation3], 0
    %8 = vsyncpa [#allocation6], 0
    %s9 = scalar_lea.sflag [#allocation6], 1
    %10 = vsyncpa %s9, 0
    %11 = vsyncpa [#allocation4], 0
    %s12 = scalar_lea.sflag [#allocation4], 1
    %13 = vsyncpa %s12, 0
    loop: start=0, step=1, limit=4
    $region2: #{tpu_custom_call.1} parent=1 // loop_pre_header
      _
    $region3: #{tpu_custom_call.1} parent=1 // loop_header
      %s15 = sphi 0, %s19
      %p16 = scmp.ge.s32.totalorder %s15, 4
      %s23 = sphi 0, %s23
      %s25 = sphi 0, %s23
      %s26 = sphi 0, %s25
      %s40 = sphi 0, %s26
      %s46 = sphi 0, %s48
      %s49 = sphi 0, %s46
      %s50 = sphi 0, %s49
      %s66 = sphi 0, %s50
      %s72 = sphi 0, %s74
      %s75 = sphi 0, %s72
      %s76 = sphi 0, %s75
      %s92 = sphi 0, %s76
    $region4: #{tpu_custom_call.1} parent=1 // loop_header_branch
      %18 = sbr.rel (%p16) target = $region8
    $region5: #{tpu_custom_call.1} parent=1 // loop_body
      %s20 = ssub.s32 %s15, 1
      %s21 = ssub.s32 %s15, 2
      %s22 = sadd.s32 %s15, 1
      %s24 = sadd.s32 %s23, 1
      %p27 = scmp.eq.s32.totalorder %s15, 1
      %p28 = scmp.ne.s32.totalorder %s23, %s25
      %p29 = scmp.eq.s32.totalorder %s15, 0
      %p30 = por %p28, %p29
      %p31 = scmp.ne.s32.totalorder %s23, %s25
      %p32 = scmp.eq.s32.totalorder %s20, 1
      %p33 = por %p31, %p32
      %p34 = scmp.ne.s32.totalorder %s25, %s26
      %p35 = scmp.eq.s32.totalorder %s20, 0
      %p36 = por %p34, %p35
      %p37 = scmp.ne.s32.totalorder %s25, %s26
      %p38 = scmp.eq.s32.totalorder %s21, 1
      %p39 = por %p37, %p38
      %p41 = scmp.ne.s32.totalorder %s26, %s40
      %p42 = scmp.eq.s32.totalorder %s21, 0
      %p43 = por %p41, %p42
      %s44 = ssub.s32 %s15, %s22
      %p45 = scmp.eq.s32.totalorder %s44, 0
      %s47 = sadd.s32 %s46, 1
      %s48 = scalar_select %p45, %s46, %s47
      %p51 = pneg %p45
      %p52 = scmp.eq.s32.totalorder %s15, 1
      %p53 = por %p51, %p52
      %p54 = scmp.ne.s32.totalorder %s46, %s49
      %p55 = scmp.eq.s32.totalorder %s15, 0
      %p56 = por %p54, %p55
      %p57 = scmp.ne.s32.totalorder %s46, %s49
      %p58 = scmp.eq.s32.totalorder %s20, 1
      %p59 = por %p57, %p58
      %p60 = scmp.ne.s32.totalorder %s49, %s50
      %p61 = scmp.eq.s32.totalorder %s20, 0
      %p62 = por %p60, %p61
      %p63 = scmp.ne.s32.totalorder %s49, %s50
      %p64 = scmp.eq.s32.totalorder %s21, 1
      %p65 = por %p63, %p64
      %p67 = scmp.ne.s32.totalorder %s50, %s66
      %p68 = scmp.eq.s32.totalorder %s21, 0
      %p69 = por %p67, %p68
      %s70 = ssub.s32 %s15, %s22
      %p71 = scmp.eq.s32.totalorder %s70, 0
      %s73 = sadd.s32 %s72, 1
      %s74 = scalar_select %p71, %s72, %s73
      %p77 = pneg %p71
      %p78 = scmp.eq.s32.totalorder %s15, 1
      %p79 = por %p77, %p78
      %p80 = scmp.ne.s32.totalorder %s72, %s75
      %p81 = scmp.eq.s32.totalorder %s15, 0
      %p82 = por %p80, %p81
      %p83 = scmp.ne.s32.totalorder %s72, %s75
      %p84 = scmp.eq.s32.totalorder %s20, 1
      %p85 = por %p83, %p84
      %p86 = scmp.ne.s32.totalorder %s75, %s76
      %p87 = scmp.eq.s32.totalorder %s20, 0
      %p88 = por %p86, %p87
      %p89 = scmp.ne.s32.totalorder %s75, %s76
      %p90 = scmp.eq.s32.totalorder %s21, 1
      %p91 = por %p89, %p90
      %p93 = scmp.ne.s32.totalorder %s76, %s92
      %p94 = scmp.eq.s32.totalorder %s21, 0
      %p95 = por %p93, %p94
      %p96 = scmp.le.s32.totalorder 1, %s15
      %p97 = scmp.lt.s32.totalorder %s15, 3
      %p98 = pnand %p96, %p97
      %p99 = pneg %p98
      // Predicated region
      $region9: #{tpu_custom_call.1} parent=5 // pred_check
        _
      $region10: #{tpu_custom_call.1} parent=5 // pred_check_branch
        %101 = sbr.rel (%p98) target = $region12
      $region11: #{tpu_custom_call.1} parent=5 // pred_region
        %s102 = ssub.s32 %s15, 1
        // Predicated region
        $region13: #{tpu_custom_call.1} parent=11 // pred_check
          %p103 = pneg %p36
        $region14: #{tpu_custom_call.1} parent=11 // pred_check_branch
          %105 = sbr.rel (%p103) target = $region16
        $region15: #{tpu_custom_call.1} parent=11 // pred_region
          %s107 = ssub.s32 8192, 8192
          %108 = vsyncadd [#allocation3], %s107
          %s109 = sshll.u32 [#allocation2], 4
          %s110 = int_to_ptr.vmem [resolvable:$true] %s109
          %115 = dma.hbm_to_vmem [thread:$0]  %s0, 8192, %s110, [#allocation3], 512, 512, 32
        $region16: #{tpu_custom_call.1} parent=11 // pred_fallthru
          _
      $region12: #{tpu_custom_call.1} parent=5 // pred_fallthru
        _
      %p116 = scmp.lt.s32.totalorder %s15, 2
      // Predicated region
      $region17: #{tpu_custom_call.1} parent=5 // pred_check
        %p117 = pneg %p116
      $region18: #{tpu_custom_call.1} parent=5 // pred_check_branch
        %119 = sbr.rel (%p117) target = $region20
      $region19: #{tpu_custom_call.1} parent=5 // pred_region
        // Predicated region
        $region21: #{tpu_custom_call.1} parent=19 // pred_check
          %p120 = pneg %p56
        $region22: #{tpu_custom_call.1} parent=19 // pred_check_branch
          %122 = sbr.rel (%p120) target = $region24
        $region23: #{tpu_custom_call.1} parent=19 // pred_region
          %s123 = sand.u32 %s46, 1
          %s124 = scalar_lea.sflag [#allocation6], %s123
          %s125 = sand.u32 %s46, 1
          %s126 = smul.addr %s125, 8
          %s127 = scalar_lea.vmem [#allocation5], %s126
          %s129 = ssub.s32 128, 128
          %130 = vsyncadd %s124, %s129
          %s131 = smul.addr %s15, 128
          %s132 = scalar_lea.hbm %s1, %s131
          %s134 = sshll.u32 %s127, 4
          %s135 = int_to_ptr.vmem [resolvable:$true] %s134
          %137 = dma.hbm_to_vmem [thread:$0]  %s132, 128, %s135, %s124
        $region24: #{tpu_custom_call.1} parent=19 // pred_fallthru
          _
      $region20: #{tpu_custom_call.1} parent=5 // pred_fallthru
        _
      %p138 = scmp.le.s32.totalorder 1, %s15
      %p139 = scmp.lt.s32.totalorder %s15, 3
      %p140 = pnand %p138, %p139
      %p141 = pneg %p140
      // Predicated region
      $region25: #{tpu_custom_call.1} parent=5 // pred_check
        _
      $region26: #{tpu_custom_call.1} parent=5 // pred_check_branch
        %143 = sbr.rel (%p140) target = $region28
      $region27: #{tpu_custom_call.1} parent=5 // pred_region
        %s144 = ssub.s32 %s15, 1
        // Predicated region
        $region29: #{tpu_custom_call.1} parent=27 // pred_check
          %p145 = pneg %p36
        $region30: #{tpu_custom_call.1} parent=27 // pred_check_branch
          %147 = sbr.rel (%p145) target = $region32
        $region31: #{tpu_custom_call.1} parent=27 // pred_region
          %148 = dma.done [#allocation3], 8192
        $region32: #{tpu_custom_call.1} parent=27 // pred_fallthru
          _
        %s149 = sand.u32 %s49, 1
        %s150 = scalar_lea.sflag [#allocation6], %s149
        %s151 = sand.u32 %s49, 1
        %s152 = smul.addr %s151, 8
        %s153 = scalar_lea.vmem [#allocation5], %s152
        // Predicated region
        $region33: #{tpu_custom_call.1} parent=27 // pred_check
          %p154 = pneg %p62
        $region34: #{tpu_custom_call.1} parent=27 // pred_check_branch
          %156 = sbr.rel (%p154) target = $region36
        $region35: #{tpu_custom_call.1} parent=27 // pred_region
          %157 = dma.done %s150, 128
        $region36: #{tpu_custom_call.1} parent=27 // pred_fallthru
          _
        %p158 = pneg %p36
        %p159 = pneg %p33
        %s160 = sand.u32 %s49, 1
        %s161 = scalar_lea.sflag [#allocation6], %s160
        %s162 = sand.u32 %s49, 1
        %s163 = smul.addr %s162, 8
        %s164 = scalar_lea.vmem [#allocation5], %s163
        %p165 = pneg %p62
        %p166 = pneg %p59
        %p167 = pneg %p88
        %p168 = pneg %p85
        %s169 = sand.u32 %s75, 1
        %s170 = scalar_lea.sflag [#allocation4], %s169
        %s171 = sand.u32 %s75, 1
        %s172 = smul.addr %s171, 32
        %s173 = scalar_lea.vmem [#allocation7], %s172
        %v174 = vld [vmem:[%s153] sm:$0xff]
        %v175 = vld [vmem:[#allocation2] sm:$0xff]
        %v176 = vld [vmem:[#allocation2 + $0x8] sm:$0xff]
        %v177 = vld [vmem:[#allocation2 + $0x10] sm:$0xff]
        %v178 = vld [vmem:[#allocation2 + $0x18] sm:$0xff]
        %v179 = vld [vmem:[#allocation2 + $0x20] sm:$0xff]
        %v180 = vld [vmem:[#allocation2 + $0x28] sm:$0xff]
        %v181 = vld [vmem:[#allocation2 + $0x30] sm:$0xff]
        %v182 = vld [vmem:[#allocation2 + $0x38] sm:$0xff]
        %v183 = vld [vmem:[#allocation2 + $0x40] sm:$0xff]
        %v184 = vld [vmem:[#allocation2 + $0x48] sm:$0xff]
        %v185 = vld [vmem:[#allocation2 + $0x50] sm:$0xff]
        %v186 = vld [vmem:[#allocation2 + $0x58] sm:$0xff]
        %v187 = vld [vmem:[#allocation2 + $0x60] sm:$0xff]
        %v188 = vld [vmem:[#allocation2 + $0x68] sm:$0xff]
        %v189 = vld [vmem:[#allocation2 + $0x70] sm:$0xff]
        %v190 = vld [vmem:[#allocation2 + $0x78] sm:$0xff]
        %v191 = vld [vmem:[#allocation2 + $0x80] sm:$0xff]
        %v192 = vld [vmem:[#allocation2 + $0x88] sm:$0xff]
        %v193 = vld [vmem:[#allocation2 + $0x90] sm:$0xff]
        %v194 = vld [vmem:[#allocation2 + $0x98] sm:$0xff]
        %v195 = vld [vmem:[#allocation2 + $0xa0] sm:$0xff]
        %v196 = vld [vmem:[#allocation2 + $0xa8] sm:$0xff]
        %v197 = vld [vmem:[#allocation2 + $0xb0] sm:$0xff]
        %v198 = vld [vmem:[#allocation2 + $0xb8] sm:$0xff]
        %v199 = vld [vmem:[#allocation2 + $0xc0] sm:$0xff]
        %v200 = vld [vmem:[#allocation2 + $0xc8] sm:$0xff]
        %v201 = vld [vmem:[#allocation2 + $0xd0] sm:$0xff]
        %v202 = vld [vmem:[#allocation2 + $0xd8] sm:$0xff]
        %v203 = vld [vmem:[#allocation2 + $0xe0] sm:$0xff]
        %v204 = vld [vmem:[#allocation2 + $0xe8] sm:$0xff]
        %v205 = vld [vmem:[#allocation2 + $0xf0] sm:$0xff]
        %v206 = vld [vmem:[#allocation2 + $0xf8] sm:$0xff]
        %v207 = vld [vmem:[#allocation2 + $0x100] sm:$0xff]
        %v208 = vld [vmem:[#allocation2 + $0x108] sm:$0xff]
        %v209 = vld [vmem:[#allocation2 + $0x110] sm:$0xff]
        %v210 = vld [vmem:[#allocation2 + $0x118] sm:$0xff]
        %v211 = vld [vmem:[#allocation2 + $0x120] sm:$0xff]
        %v212 = vld [vmem:[#allocation2 + $0x128] sm:$0xff]
        %v213 = vld [vmem:[#allocation2 + $0x130] sm:$0xff]
        %v214 = vld [vmem:[#allocation2 + $0x138] sm:$0xff]
        %v215 = vld [vmem:[#allocation2 + $0x140] sm:$0xff]
        %v216 = vld [vmem:[#allocation2 + $0x148] sm:$0xff]
        %v217 = vld [vmem:[#allocation2 + $0x150] sm:$0xff]
        %v218 = vld [vmem:[#allocation2 + $0x158] sm:$0xff]
        %v219 = vld [vmem:[#allocation2 + $0x160] sm:$0xff]
        %v220 = vld [vmem:[#allocation2 + $0x168] sm:$0xff]
        %v221 = vld [vmem:[#allocation2 + $0x170] sm:$0xff]
        %v222 = vld [vmem:[#allocation2 + $0x178] sm:$0xff]
        %v223 = vld [vmem:[#allocation2 + $0x180] sm:$0xff]
        %v224 = vld [vmem:[#allocation2 + $0x188] sm:$0xff]
        %v225 = vld [vmem:[#allocation2 + $0x190] sm:$0xff]
        %v226 = vld [vmem:[#allocation2 + $0x198] sm:$0xff]
        %v227 = vld [vmem:[#allocation2 + $0x1a0] sm:$0xff]
        %v228 = vld [vmem:[#allocation2 + $0x1a8] sm:$0xff]
        %v229 = vld [vmem:[#allocation2 + $0x1b0] sm:$0xff]
        %v230 = vld [vmem:[#allocation2 + $0x1b8] sm:$0xff]
        %v231 = vld [vmem:[#allocation2 + $0x1c0] sm:$0xff]
        %v232 = vld [vmem:[#allocation2 + $0x1c8] sm:$0xff]
        %v233 = vld [vmem:[#allocation2 + $0x1d0] sm:$0xff]
        %v234 = vld [vmem:[#allocation2 + $0x1d8] sm:$0xff]
        %v235 = vld [vmem:[#allocation2 + $0x1e0] sm:$0xff]
        %v236 = vld [vmem:[#allocation2 + $0x1e8] sm:$0xff]
        %v237 = vld [vmem:[#allocation2 + $0x1f0] sm:$0xff]
        %v238 = vld [vmem:[#allocation2 + $0x1f8] sm:$0xff]
        %239 = vmatprep.subr.mxu0 %v176
        %240 = vmatpush1.msra.mxu0 %v175
        %241 = vmatprep.subr.mxu0 %v180
        %242 = vmatpush1.msra.mxu0 %v179
        %243 = vmatprep.subr.mxu0 %v184
        %244 = vmatpush1.msra.mxu0 %v183
        %245 = vmatprep.subr.mxu0 %v188
        %246 = vmatpush1.msra.mxu0 %v187
        %247 = vmatprep.subr.mxu0 %v192
        %248 = vmatpush1.msra.mxu0 %v191
        %249 = vmatprep.subr.mxu0 %v196
        %250 = vmatpush1.msra.mxu0 %v195
        %251 = vmatprep.subr.mxu0 %v200
        %252 = vmatpush1.msra.mxu0 %v199
        %253 = vmatprep.subr.mxu0 %v204
        %254 = vmatpush1.msra.mxu0 %v203
        %255 = vmatprep.subr.mxu0 %v208
        %256 = vmatpush1.msra.mxu0 %v207
        %257 = vmatprep.subr.mxu0 %v212
        %258 = vmatpush1.msra.mxu0 %v211
        %259 = vmatprep.subr.mxu0 %v216
        %260 = vmatpush1.msra.mxu0 %v215
        %261 = vmatprep.subr.mxu0 %v220
        %262 = vmatpush1.msra.mxu0 %v219
        %263 = vmatprep.subr.mxu0 %v224
        %264 = vmatpush1.msra.mxu0 %v223
        %265 = vmatprep.subr.mxu0 %v228
        %266 = vmatpush1.msra.mxu0 %v227
        %267 = vmatprep.subr.mxu0 %v232
        %268 = vmatpush1.msra.mxu0 %v231
        %269 = vmatprep.subr.mxu0 %v236
        %270 = vmatpush1.msra.mxu0 %v235
        %271 = vmatprep.subr.mxu0 0.0
        %272 = vmatpush1.msra.mxu0 0.0
        %273 = vmatprep.subr.mxu0 0.0
        %274 = vmatpush1.msra.mxu0 0.0
        %275 = vmatprep.subr.mxu0 0.0
        %276 = vmatpush1.msra.mxu0 0.0
        %277 = vmatprep.subr.mxu0 0.0
        %278 = vmatpush1.msra.mxu0 0.0
        %279 = vmatprep.subr.mxu0 0.0
        %280 = vmatpush1.msra.mxu0 0.0
        %281 = vmatprep.subr.mxu0 0.0
        %282 = vmatpush1.msra.mxu0 0.0
        %283 = vmatprep.subr.mxu0 0.0
        %284 = vmatpush1.msra.mxu0 0.0
        %285 = vmatprep.subr.mxu0 0.0
        %286 = vmatpush1.msra.mxu0 0.0
        %287 = vmatprep.subr.mxu0 0.0
        %288 = vmatpush1.msra.mxu0 0.0
        %289 = vmatprep.subr.mxu0 0.0
        %290 = vmatpush1.msra.mxu0 0.0
        %291 = vmatprep.subr.mxu0 0.0
        %292 = vmatpush1.msra.mxu0 0.0
        %293 = vmatprep.subr.mxu0 0.0
        %294 = vmatpush1.msra.mxu0 0.0
        %295 = vmatprep.subr.mxu0 0.0
        %296 = vmatpush1.msra.mxu0 0.0
        %297 = vmatprep.subr.mxu0 0.0
        %298 = vmatpush1.msra.mxu0 0.0
        %299 = vmatprep.subr.mxu0 0.0
        %300 = vmatpush1.msra.mxu0 0.0
        %301 = vmatprep.subr.mxu0 0.0
        %302 = vmatpush1.msra.mxu0 0.0
        %303 = vmatprep.mubr.f32.mxu0 0.0
        %304 = vmatmul.mubr.f32.gmra.mrb[0].mxu0 %v174
        %v305 = vpop.f32.mrb[0].mxu0
        %v306 = vadd.f32 0.0, %v305
        %v307 = vpop.f32.mrb[0].mxu0
        %v308 = vadd.f32 0.0, %v307
        %309 = vdwg.mxu0
        %310 = vmatprep.subr.mxu0 %v178
        %311 = vmatpush1.msra.mxu0 %v177
        %312 = vmatprep.subr.mxu0 %v182
        %313 = vmatpush1.msra.mxu0 %v181
        %314 = vmatprep.subr.mxu0 %v186
        %315 = vmatpush1.msra.mxu0 %v185
        %316 = vmatprep.subr.mxu0 %v190
        %317 = vmatpush1.msra.mxu0 %v189
        %318 = vmatprep.subr.mxu0 %v194
        %319 = vmatpush1.msra.mxu0 %v193
        %320 = vmatprep.subr.mxu0 %v198
        %321 = vmatpush1.msra.mxu0 %v197
        %322 = vmatprep.subr.mxu0 %v202
        %323 = vmatpush1.msra.mxu0 %v201
        %324 = vmatprep.subr.mxu0 %v206
        %325 = vmatpush1.msra.mxu0 %v205
        %326 = vmatprep.subr.mxu0 %v210
        %327 = vmatpush1.msra.mxu0 %v209
        %328 = vmatprep.subr.mxu0 %v214
        %329 = vmatpush1.msra.mxu0 %v213
        %330 = vmatprep.subr.mxu0 %v218
        %331 = vmatpush1.msra.mxu0 %v217
        %332 = vmatprep.subr.mxu0 %v222
        %333 = vmatpush1.msra.mxu0 %v221
        %334 = vmatprep.subr.mxu0 %v226
        %335 = vmatpush1.msra.mxu0 %v225
        %336 = vmatprep.subr.mxu0 %v230
        %337 = vmatpush1.msra.mxu0 %v229
        %338 = vmatprep.subr.mxu0 %v234
        %339 = vmatpush1.msra.mxu0 %v233
        %340 = vmatprep.subr.mxu0 %v238
        %341 = vmatpush1.msra.mxu0 %v237
        %342 = vmatprep.subr.mxu0 0.0
        %343 = vmatpush1.msra.mxu0 0.0
        %344 = vmatprep.subr.mxu0 0.0
        %345 = vmatpush1.msra.mxu0 0.0
        %346 = vmatprep.subr.mxu0 0.0
        %347 = vmatpush1.msra.mxu0 0.0
        %348 = vmatprep.subr.mxu0 0.0
        %349 = vmatpush1.msra.mxu0 0.0
        %350 = vmatprep.subr.mxu0 0.0
        %351 = vmatpush1.msra.mxu0 0.0
        %352 = vmatprep.subr.mxu0 0.0
        %353 = vmatpush1.msra.mxu0 0.0
        %354 = vmatprep.subr.mxu0 0.0
        %355 = vmatpush1.msra.mxu0 0.0
        %356 = vmatprep.subr.mxu0 0.0
        %357 = vmatpush1.msra.mxu0 0.0
        %358 = vmatprep.subr.mxu0 0.0
        %359 = vmatpush1.msra.mxu0 0.0
        %360 = vmatprep.subr.mxu0 0.0
        %361 = vmatpush1.msra.mxu0 0.0
        %362 = vmatprep.subr.mxu0 0.0
        %363 = vmatpush1.msra.mxu0 0.0
        %364 = vmatprep.subr.mxu0 0.0
        %365 = vmatpush1.msra.mxu0 0.0
        %366 = vmatprep.subr.mxu0 0.0
        %367 = vmatpush1.msra.mxu0 0.0
        %368 = vmatprep.subr.mxu0 0.0
        %369 = vmatpush1.msra.mxu0 0.0
        %370 = vmatprep.subr.mxu0 0.0
        %371 = vmatpush1.msra.mxu0 0.0
        %372 = vmatprep.subr.mxu0 0.0
        %373 = vmatpush1.msra.mxu0 0.0
        %374 = vmatprep.mubr.f32.mxu0 0.0
        %375 = vmatmul.mubr.f32.gmra.mrb[0].mxu0 %v174
        %v376 = vpop.f32.mrb[0].mxu0
        %v377 = vadd.f32 0.0, %v376
        %v378 = vpop.f32.mrb[0].mxu0
        %v379 = vadd.f32 0.0, %v378
        %380 = vdwg.mxu0
        %381 = vst [vmem:[%s173] sm:$0xff] %v306
        %382 = vst [vmem:[%s173 + $0x8] sm:$0xff] %v308
        %383 = vst [vmem:[%s173 + $0x10] sm:$0xff] %v377
        %384 = vst [vmem:[%s173 + $0x18] sm:$0xff] %v379
        %s385 = sand.u32 %s75, 1
        %s386 = scalar_lea.sflag [#allocation4], %s385
        %s387 = sand.u32 %s75, 1
        %s388 = smul.addr %s387, 32
        %s389 = scalar_lea.vmem [#allocation7], %s388
        // Predicated region
        $region37: #{tpu_custom_call.1} parent=27 // pred_check
          %p390 = pneg %p85
        $region38: #{tpu_custom_call.1} parent=27 // pred_check_branch
          %392 = sbr.rel (%p390) target = $region40
        $region39: #{tpu_custom_call.1} parent=27 // pred_region
          %s394 = ssub.s32 512, 512
          %395 = vsyncadd %s386, %s394
          %s396 = smul.addr %s20, 4
          %s397 = smul.addr %s396, 128
          %s398 = scalar_lea.hbm %s2, %s397
          %s400 = sshll.u32 %s389, 4
          %s401 = int_to_ptr.vmem [resolvable:$true] %s400
          %403 = dma.vmem_to_hbm [thread:$0]  %s401, 512, %s398, %s386
        $region40: #{tpu_custom_call.1} parent=27 // pred_fallthru
          _
      $region28: #{tpu_custom_call.1} parent=5 // pred_fallthru
        _
      %p404 = scmp.le.s32.totalorder 2, %s15
      // Predicated region
      $region41: #{tpu_custom_call.1} parent=5 // pred_check
        %p405 = pneg %p404
      $region42: #{tpu_custom_call.1} parent=5 // pred_check_branch
        %407 = sbr.rel (%p405) target = $region44
      $region43: #{tpu_custom_call.1} parent=5 // pred_region
        %s408 = ssub.s32 %s15, 2
        // Predicated region
        $region45: #{tpu_custom_call.1} parent=43 // pred_check
          %p409 = pneg %p91
        $region46: #{tpu_custom_call.1} parent=43 // pred_check_branch
          %411 = sbr.rel (%p409) target = $region48
        $region47: #{tpu_custom_call.1} parent=43 // pred_region
          %s412 = sand.u32 %s76, 1
          %s413 = scalar_lea.sflag [#allocation4], %s412
          %s414 = sand.u32 %s76, 1
          %s415 = smul.addr %s414, 32
          %s416 = scalar_lea.vmem [#allocation7], %s415
          %417 = dma.done %s413, 512
        $region48: #{tpu_custom_call.1} parent=43 // pred_fallthru
          _
      $region44: #{tpu_custom_call.1} parent=5 // pred_fallthru
        _
    $region6: #{tpu_custom_call.1} parent=1 // loop_footer
      %s19 = sadd.s32 1, %s15
    $region7: #{tpu_custom_call.1} parent=1 // loop_footer_branch
      %14 = sbr.rel target = $region3
    $region8: #{tpu_custom_call.1} parent=1 // loop_exit
      _
    %418 = vsyncpa [#allocation3], 1
    %s419 = scalar_lea.sflag [#allocation3], 1
    %420 = vsyncpa %s419, 1
    %421 = vsyncpa [#allocation6], 1
    %s422 = scalar_lea.sflag [#allocation6], 1
    %423 = vsyncpa %s422, 1
    %424 = vsyncpa [#allocation4], 1
    %s425 = scalar_lea.sflag [#allocation4], 1
    %426 = vsyncpa %s425, 1

// kernel: tpu_custom_call.1
$region0: #{tpu_custom_call.1}
  #allocation0 [shape = 'u32[]', space=smem, size = 0x4, offset = 0x4, fixed_abs, tag = 'smem constant byte address 0x4 - core index']
  #allocation1 [shape = 'u32[144,128]{1,0:T(1,128)}', space=vmem, size = 0x12000, scoped, tag = 'internal scratch']
  %s0 = inlined_call_operand.hbm [shape: f32[128,512], index: 0, kind: input, shape index: {}]
  %s1 = inlined_call_operand.hbm [shape: f32[16,128], index: 1, kind: input, shape index: {}]
  %s2 = inlined_call_operand.hbm [shape: f32[16,512], index: 2, kind: output, shape index: {}]
  %s3 = sld [smem:[#allocation0]]
  $region49: #{tpu_custom_call.1} parent=0
    _
  %s5 = ssub.s32 1, %s3
  %s6 = scalar_select 0, %s5, %s3
  $region1: #{tpu_custom_call.1} parent=0
    #allocation2 [shape = 'u8[262144]{0}', space=vmem, size = 0x40000, scoped, tag = 'input window, operand 0, single buffered']
    #allocation3 [shape = 's32[2]{0}', space=sflag, size = 0x8, scoped, tag = 'scoped memory for tpu_custom_call.1']
    #allocation4 [shape = 's32[2]{0}', space=sflag, size = 0x8, scoped, tag = 'scoped memory for tpu_custom_call.1']
    #allocation5 [shape = 'u8[8192]{0}', space=vmem, size = 0x2000, scoped, tag = 'input window, operand 1']
    #allocation6 [shape = 's32[2]{0}', space=sflag, size = 0x8, scoped, tag = 'scoped memory for tpu_custom_call.1']
    #allocation7 [shape = 'u8[32768]{0}', space=vmem, size = 0x8000, scoped, tag = 'output window, operand 0']
    %7 = vsyncpa [#allocation3], 0
    %8 = vsyncpa [#allocation6], 0
    %s9 = scalar_lea.sflag [#allocation6], 1
    %10 = vsyncpa %s9, 0
    %11 = vsyncpa [#allocation4], 0
    %s12 = scalar_lea.sflag [#allocation4], 1
    %13 = vsyncpa %s12, 0
    loop: start=0, step=1, limit=4
    $region2: #{tpu_custom_call.1} parent=1 // loop_pre_header
      _
    $region3: #{tpu_custom_call.1} parent=1 // loop_header
      %s15 = sphi 0, %s19
      %p16 = scmp.ge.s32.totalorder %s15, 4
      %s23 = sphi 0, %s23
      %s25 = sphi 0, %s23
      %s26 = sphi 0, %s25
      %s40 = sphi 0, %s26
      %s46 = sphi 0, %s48
      %s49 = sphi 0, %s46
      %s50 = sphi 0, %s49
      %s66 = sphi 0, %s50
      %s72 = sphi 0, %s74
      %s75 = sphi 0, %s72
      %s76 = sphi 0, %s75
      %s92 = sphi 0, %s76
    $region4: #{tpu_custom_call.1} parent=1 // loop_header_branch
      %18 = sbr.rel (%p16) target = $region8
    $region5: #{tpu_custom_call.1} parent=1 // loop_body
      %s20 = ssub.s32 %s15, 1
      %s21 = ssub.s32 %s15, 2
      %s22 = sadd.s32 %s15, 1
      %s24 = sadd.s32 %s23, 1
      %p27 = scmp.eq.s32.totalorder %s15, 1
      %p28 = scmp.ne.s32.totalorder %s23, %s25
      %p29 = scmp.eq.s32.totalorder %s15, 0
      %p30 = por %p28, %p29
      %p31 = scmp.ne.s32.totalorder %s23, %s25
      %p32 = scmp.eq.s32.totalorder %s20, 1
      %p33 = por %p31, %p32
      %p34 = scmp.ne.s32.totalorder %s25, %s26
      %p35 = scmp.eq.s32.totalorder %s20, 0
      %p36 = por %p34, %p35
      %p37 = scmp.ne.s32.totalorder %s25, %s26
      %p38 = scmp.eq.s32.totalorder %s21, 1
      %p39 = por %p37, %p38
      %p41 = scmp.ne.s32.totalorder %s26, %s40
      %p42 = scmp.eq.s32.totalorder %s21, 0
      %p43 = por %p41, %p42
      %s44 = ssub.s32 %s15, %s22
      %p45 = scmp.eq.s32.totalorder %s44, 0
      %s47 = sadd.s32 %s46, 1
      %s48 = scalar_select %p45, %s46, %s47
      %p51 = pneg %p45
      %p52 = scmp.eq.s32.totalorder %s15, 1
      %p53 = por %p51, %p52
      %p54 = scmp.ne.s32.totalorder %s46, %s49
      %p55 = scmp.eq.s32.totalorder %s15, 0
      %p56 = por %p54, %p55
      %p57 = scmp.ne.s32.totalorder %s46, %s49
      %p58 = scmp.eq.s32.totalorder %s20, 1
      %p59 = por %p57, %p58
      %p60 = scmp.ne.s32.totalorder %s49, %s50
      %p61 = scmp.eq.s32.totalorder %s20, 0
      %p62 = por %p60, %p61
      %p63 = scmp.ne.s32.totalorder %s49, %s50
      %p64 = scmp.eq.s32.totalorder %s21, 1
      %p65 = por %p63, %p64
      %p67 = scmp.ne.s32.totalorder %s50, %s66
      %p68 = scmp.eq.s32.totalorder %s21, 0
      %p69 = por %p67, %p68
      %s70 = ssub.s32 %s15, %s22
      %p71 = scmp.eq.s32.totalorder %s70, 0
      %s73 = sadd.s32 %s72, 1
      %s74 = scalar_select %p71, %s72, %s73
      %p77 = pneg %p71
      %p78 = scmp.eq.s32.totalorder %s15, 1
      %p79 = por %p77, %p78
      %p80 = scmp.ne.s32.totalorder %s72, %s75
      %p81 = scmp.eq.s32.totalorder %s15, 0
      %p82 = por %p80, %p81
      %p83 = scmp.ne.s32.totalorder %s72, %s75
      %p84 = scmp.eq.s32.totalorder %s20, 1
      %p85 = por %p83, %p84
      %p86 = scmp.ne.s32.totalorder %s75, %s76
      %p87 = scmp.eq.s32.totalorder %s20, 0
      %p88 = por %p86, %p87
      %p89 = scmp.ne.s32.totalorder %s75, %s76
      %p90 = scmp.eq.s32.totalorder %s21, 1
      %p91 = por %p89, %p90
      %p93 = scmp.ne.s32.totalorder %s76, %s92
      %p94 = scmp.eq.s32.totalorder %s21, 0
      %p95 = por %p93, %p94
      %p96 = scmp.le.s32.totalorder 1, %s15
      %p97 = scmp.lt.s32.totalorder %s15, 3
      %p98 = pnand %p96, %p97
      %p99 = pneg %p98
      // Predicated region
      $region9: #{tpu_custom_call.1} parent=5 // pred_check
        _
      $region10: #{tpu_custom_call.1} parent=5 // pred_check_branch
        %101 = sbr.rel (%p98) target = $region12
      $region11: #{tpu_custom_call.1} parent=5 // pred_region
        %s102 = ssub.s32 %s15, 1
        // Predicated region
        $region13: #{tpu_custom_call.1} parent=11 // pred_check
          %p103 = pneg %p36
        $region14: #{tpu_custom_call.1} parent=11 // pred_check_branch
          %105 = sbr.rel (%p103) target = $region16
        $region15: #{tpu_custom_call.1} parent=11 // pred_region
          %s107 = ssub.s32 8192, 8192
          %108 = vsyncadd [#allocation3], %s107
          %s109 = sshll.u32 [#allocation2], 4
          %s110 = int_to_ptr.vmem [resolvable:$true] %s109
          %115 = dma.hbm_to_vmem [thread:$0]  %s0, 8192, %s110, [#allocation3], 512, 512, 32
        $region16: #{tpu_custom_call.1} parent=11 // pred_fallthru
          _
      $region12: #{tpu_custom_call.1} parent=5 // pred_fallthru
        _
      %p116 = scmp.lt.s32.totalorder %s15, 2
      // Predicated region
      $region17: #{tpu_custom_call.1} parent=5 // pred_check
        %p117 = pneg %p116
      $region18: #{tpu_custom_call.1} parent=5 // pred_check_branch
        %119 = sbr.rel (%p117) target = $region20
      $region19: #{tpu_custom_call.1} parent=5 // pred_region
        // Predicated region
        $region21: #{tpu_custom_call.1} parent=19 // pred_check
          %p120 = pneg %p56
        $region22: #{tpu_custom_call.1} parent=19 // pred_check_branch
          %122 = sbr.rel (%p120) target = $region24
        $region23: #{tpu_custom_call.1} parent=19 // pred_region
          %s123 = sand.u32 %s46, 1
          %s124 = scalar_lea.sflag [#allocation6], %s123
          %s125 = sand.u32 %s46, 1
          %s126 = smul.addr %s125, 8
          %s127 = scalar_lea.vmem [#allocation5], %s126
          %s129 = ssub.s32 128, 128
          %130 = vsyncadd %s124, %s129
          %s131 = smul.addr %s15, 128
          %s132 = scalar_lea.hbm %s1, %s131
          %s134 = sshll.u32 %s127, 4
          %s135 = int_to_ptr.vmem [resolvable:$true] %s134
          %137 = dma.hbm_to_vmem [thread:$0]  %s132, 128, %s135, %s124
        $region24: #{tpu_custom_call.1} parent=19 // pred_fallthru
          _
      $region20: #{tpu_custom_call.1} parent=5 // pred_fallthru
        _
      %p138 = scmp.le.s32.totalorder 1, %s15
      %p139 = scmp.lt.s32.totalorder %s15, 3
      %p140 = pnand %p138, %p139
      %p141 = pneg %p140
      // Predicated region
      $region25: #{tpu_custom_call.1} parent=5 // pred_check
        _
      $region26: #{tpu_custom_call.1} parent=5 // pred_check_branch
        %143 = sbr.rel (%p140) target = $region28
      $region27: #{tpu_custom_call.1} parent=5 // pred_region
        %s144 = ssub.s32 %s15, 1
        // Predicated region
        $region29: #{tpu_custom_call.1} parent=27 // pred_check
          %p145 = pneg %p36
        $region30: #{tpu_custom_call.1} parent=27 // pred_check_branch
          %147 = sbr.rel (%p145) target = $region32
        $region31: #{tpu_custom_call.1} parent=27 // pred_region
          %148 = dma.done [#allocation3], 8192
        $region32: #{tpu_custom_call.1} parent=27 // pred_fallthru
          _
        %s149 = sand.u32 %s49, 1
        %s150 = scalar_lea.sflag [#allocation6], %s149
        %s151 = sand.u32 %s49, 1
        %s152 = smul.addr %s151, 8
        %s153 = scalar_lea.vmem [#allocation5], %s152
        // Predicated region
        $region33: #{tpu_custom_call.1} parent=27 // pred_check
          %p154 = pneg %p62
        $region34: #{tpu_custom_call.1} parent=27 // pred_check_branch
          %156 = sbr.rel (%p154) target = $region36
        $region35: #{tpu_custom_call.1} parent=27 // pred_region
          %157 = dma.done %s150, 128
        $region36: #{tpu_custom_call.1} parent=27 // pred_fallthru
          _
        %p158 = pneg %p36
        %p159 = pneg %p33
        %s160 = sand.u32 %s49, 1
        %s161 = scalar_lea.sflag [#allocation6], %s160
        %s162 = sand.u32 %s49, 1
        %s163 = smul.addr %s162, 8
        %s164 = scalar_lea.vmem [#allocation5], %s163
        %p165 = pneg %p62
        %p166 = pneg %p59
        %p167 = pneg %p88
        %p168 = pneg %p85
        %s169 = sand.u32 %s75, 1
        %s170 = scalar_lea.sflag [#allocation4], %s169
        %s171 = sand.u32 %s75, 1
        %s172 = smul.addr %s171, 32
        %s173 = scalar_lea.vmem [#allocation7], %s172
        %v174 = vld [vmem:[%s153] sm:$0xff]
        %v175 = vld [vmem:[#allocation2] sm:$0xff]
        %v176 = vld [vmem:[#allocation2 + $0x8] sm:$0xff]
        %v177 = vld [vmem:[#allocation2 + $0x10] sm:$0xff]
        %v178 = vld [vmem:[#allocation2 + $0x18] sm:$0xff]
        %v179 = vld [vmem:[#allocation2 + $0x20] sm:$0xff]
        %v180 = vld [vmem:[#allocation2 + $0x28] sm:$0xff]
        %v181 = vld [vmem:[#allocation2 + $0x30] sm:$0xff]
        %v182 = vld [vmem:[#allocation2 + $0x38] sm:$0xff]
        %v183 = vld [vmem:[#allocation2 + $0x40] sm:$0xff]
        %v184 = vld [vmem:[#allocation2 + $0x48] sm:$0xff]
        %v185 = vld [vmem:[#allocation2 + $0x50] sm:$0xff]
        %v186 = vld [vmem:[#allocation2 + $0x58] sm:$0xff]
        %v187 = vld [vmem:[#allocation2 + $0x60] sm:$0xff]
        %v188 = vld [vmem:[#allocation2 + $0x68] sm:$0xff]
        %v189 = vld [vmem:[#allocation2 + $0x70] sm:$0xff]
        %v190 = vld [vmem:[#allocation2 + $0x78] sm:$0xff]
        %v191 = vld [vmem:[#allocation2 + $0x80] sm:$0xff]
        %v192 = vld [vmem:[#allocation2 + $0x88] sm:$0xff]
        %v193 = vld [vmem:[#allocation2 + $0x90] sm:$0xff]
        %v194 = vld [vmem:[#allocation2 + $0x98] sm:$0xff]
        %v195 = vld [vmem:[#allocation2 + $0xa0] sm:$0xff]
        %v196 = vld [vmem:[#allocation2 + $0xa8] sm:$0xff]
        %v197 = vld [vmem:[#allocation2 + $0xb0] sm:$0xff]
        %v198 = vld [vmem:[#allocation2 + $0xb8] sm:$0xff]
        %v199 = vld [vmem:[#allocation2 + $0xc0] sm:$0xff]
        %v200 = vld [vmem:[#allocation2 + $0xc8] sm:$0xff]
        %v201 = vld [vmem:[#allocation2 + $0xd0] sm:$0xff]
        %v202 = vld [vmem:[#allocation2 + $0xd8] sm:$0xff]
        %v203 = vld [vmem:[#allocation2 + $0xe0] sm:$0xff]
        %v204 = vld [vmem:[#allocation2 + $0xe8] sm:$0xff]
        %v205 = vld [vmem:[#allocation2 + $0xf0] sm:$0xff]
        %v206 = vld [vmem:[#allocation2 + $0xf8] sm:$0xff]
        %v207 = vld [vmem:[#allocation2 + $0x100] sm:$0xff]
        %v208 = vld [vmem:[#allocation2 + $0x108] sm:$0xff]
        %v209 = vld [vmem:[#allocation2 + $0x110] sm:$0xff]
        %v210 = vld [vmem:[#allocation2 + $0x118] sm:$0xff]
        %v211 = vld [vmem:[#allocation2 + $0x120] sm:$0xff]
        %v212 = vld [vmem:[#allocation2 + $0x128] sm:$0xff]
        %v213 = vld [vmem:[#allocation2 + $0x130] sm:$0xff]
        %v214 = vld [vmem:[#allocation2 + $0x138] sm:$0xff]
        %v215 = vld [vmem:[#allocation2 + $0x140] sm:$0xff]
        %v216 = vld [vmem:[#allocation2 + $0x148] sm:$0xff]
        %v217 = vld [vmem:[#allocation2 + $0x150] sm:$0xff]
        %v218 = vld [vmem:[#allocation2 + $0x158] sm:$0xff]
        %v219 = vld [vmem:[#allocation2 + $0x160] sm:$0xff]
        %v220 = vld [vmem:[#allocation2 + $0x168] sm:$0xff]
        %v221 = vld [vmem:[#allocation2 + $0x170] sm:$0xff]
        %v222 = vld [vmem:[#allocation2 + $0x178] sm:$0xff]
        %v223 = vld [vmem:[#allocation2 + $0x180] sm:$0xff]
        %v224 = vld [vmem:[#allocation2 + $0x188] sm:$0xff]
        %v225 = vld [vmem:[#allocation2 + $0x190] sm:$0xff]
        %v226 = vld [vmem:[#allocation2 + $0x198] sm:$0xff]
        %v227 = vld [vmem:[#allocation2 + $0x1a0] sm:$0xff]
        %v228 = vld [vmem:[#allocation2 + $0x1a8] sm:$0xff]
        %v229 = vld [vmem:[#allocation2 + $0x1b0] sm:$0xff]
        %v230 = vld [vmem:[#allocation2 + $0x1b8] sm:$0xff]
        %v231 = vld [vmem:[#allocation2 + $0x1c0] sm:$0xff]
        %v232 = vld [vmem:[#allocation2 + $0x1c8] sm:$0xff]
        %v233 = vld [vmem:[#allocation2 + $0x1d0] sm:$0xff]
        %v234 = vld [vmem:[#allocation2 + $0x1d8] sm:$0xff]
        %v235 = vld [vmem:[#allocation2 + $0x1e0] sm:$0xff]
        %v236 = vld [vmem:[#allocation2 + $0x1e8] sm:$0xff]
        %v237 = vld [vmem:[#allocation2 + $0x1f0] sm:$0xff]
        %v238 = vld [vmem:[#allocation2 + $0x1f8] sm:$0xff]
        %239 = vmatprep.subr.mxu0 %v176
        %240 = vmatpush1.msra.mxu0 %v175
        %241 = vmatprep.subr.mxu0 %v180
        %242 = vmatpush1.msra.mxu0 %v179
        %243 = vmatprep.subr.mxu0 %v184
        %244 = vmatpush1.msra.mxu0 %v183
        %245 = vmatprep.subr.mxu0 %v188
        %246 = vmatpush1.msra.mxu0 %v187
        %247 = vmatprep.subr.mxu0 %v192
        %248 = vmatpush1.msra.mxu0 %v191
        %249 = vmatprep.subr.mxu0 %v196
        %250 = vmatpush1.msra.mxu0 %v195
        %251 = vmatprep.subr.mxu0 %v200
        %252 = vmatpush1.msra.mxu0 %v199
        %253 = vmatprep.subr.mxu0 %v204
        %254 = vmatpush1.msra.mxu0 %v203
        %255 = vmatprep.subr.mxu0 %v208
        %256 = vmatpush1.msra.mxu0 %v207
        %257 = vmatprep.subr.mxu0 %v212
        %258 = vmatpush1.msra.mxu0 %v211
        %259 = vmatprep.subr.mxu0 %v216
        %260 = vmatpush1.msra.mxu0 %v215
        %261 = vmatprep.subr.mxu0 %v220
        %262 = vmatpush1.msra.mxu0 %v219
        %263 = vmatprep.subr.mxu0 %v224
        %264 = vmatpush1.msra.mxu0 %v223
        %265 = vmatprep.subr.mxu0 %v228
        %266 = vmatpush1.msra.mxu0 %v227
        %267 = vmatprep.subr.mxu0 %v232
        %268 = vmatpush1.msra.mxu0 %v231
        %269 = vmatprep.subr.mxu0 %v236
        %270 = vmatpush1.msra.mxu0 %v235
        %271 = vmatprep.subr.mxu0 0.0
        %272 = vmatpush1.msra.mxu0 0.0
        %273 = vmatprep.subr.mxu0 0.0
        %274 = vmatpush1.msra.mxu0 0.0
        %275 = vmatprep.subr.mxu0 0.0
        %276 = vmatpush1.msra.mxu0 0.0
        %277 = vmatprep.subr.mxu0 0.0
        %278 = vmatpush1.msra.mxu0 0.0
        %279 = vmatprep.subr.mxu0 0.0
        %280 = vmatpush1.msra.mxu0 0.0
        %281 = vmatprep.subr.mxu0 0.0
        %282 = vmatpush1.msra.mxu0 0.0
        %283 = vmatprep.subr.mxu0 0.0
        %284 = vmatpush1.msra.mxu0 0.0
        %285 = vmatprep.subr.mxu0 0.0
        %286 = vmatpush1.msra.mxu0 0.0
        %287 = vmatprep.subr.mxu0 0.0
        %288 = vmatpush1.msra.mxu0 0.0
        %289 = vmatprep.subr.mxu0 0.0
        %290 = vmatpush1.msra.mxu0 0.0
        %291 = vmatprep.subr.mxu0 0.0
        %292 = vmatpush1.msra.mxu0 0.0
        %293 = vmatprep.subr.mxu0 0.0
        %294 = vmatpush1.msra.mxu0 0.0
        %295 = vmatprep.subr.mxu0 0.0
        %296 = vmatpush1.msra.mxu0 0.0
        %297 = vmatprep.subr.mxu0 0.0
        %298 = vmatpush1.msra.mxu0 0.0
        %299 = vmatprep.subr.mxu0 0.0
        %300 = vmatpush1.msra.mxu0 0.0
        %301 = vmatprep.subr.mxu0 0.0
        %302 = vmatpush1.msra.mxu0 0.0
        %303 = vmatprep.mubr.f32.mxu0 0.0
        %304 = vmatmul.mubr.f32.gmra.mrb[0].mxu0 %v174
        %v305 = vpop.f32.mrb[0].mxu0
        %v306 = vadd.f32 0.0, %v305
        %v307 = vpop.f32.mrb[0].mxu0
        %v308 = vadd.f32 0.0, %v307
        %309 = vdwg.mxu0
        %310 = vmatprep.subr.mxu0 %v178
        %311 = vmatpush1.msra.mxu0 %v177
        %312 = vmatprep.subr.mxu0 %v182
        %313 = vmatpush1.msra.mxu0 %v181
        %314 = vmatprep.subr.mxu0 %v186
        %315 = vmatpush1.msra.mxu0 %v185
        %316 = vmatprep.subr.mxu0 %v190
        %317 = vmatpush1.msra.mxu0 %v189
        %318 = vmatprep.subr.mxu0 %v194
        %319 = vmatpush1.msra.mxu0 %v193
        %320 = vmatprep.subr.mxu0 %v198
        %321 = vmatpush1.msra.mxu0 %v197
        %322 = vmatprep.subr.mxu0 %v202
        %323 = vmatpush1.msra.mxu0 %v201
        %324 = vmatprep.subr.mxu0 %v206
        %325 = vmatpush1.msra.mxu0 %v205
        %326 = vmatprep.subr.mxu0 %v210
        %327 = vmatpush1.msra.mxu0 %v209
        %328 = vmatprep.subr.mxu0 %v214
        %329 = vmatpush1.msra.mxu0 %v213
        %330 = vmatprep.subr.mxu0 %v218
        %331 = vmatpush1.msra.mxu0 %v217
        %332 = vmatprep.subr.mxu0 %v222
        %333 = vmatpush1.msra.mxu0 %v221
        %334 = vmatprep.subr.mxu0 %v226
        %335 = vmatpush1.msra.mxu0 %v225
        %336 = vmatprep.subr.mxu0 %v230
        %337 = vmatpush1.msra.mxu0 %v229
        %338 = vmatprep.subr.mxu0 %v234
        %339 = vmatpush1.msra.mxu0 %v233
        %340 = vmatprep.subr.mxu0 %v238
        %341 = vmatpush1.msra.mxu0 %v237
        %342 = vmatprep.subr.mxu0 0.0
        %343 = vmatpush1.msra.mxu0 0.0
        %344 = vmatprep.subr.mxu0 0.0
        %345 = vmatpush1.msra.mxu0 0.0
        %346 = vmatprep.subr.mxu0 0.0
        %347 = vmatpush1.msra.mxu0 0.0
        %348 = vmatprep.subr.mxu0 0.0
        %349 = vmatpush1.msra.mxu0 0.0
        %350 = vmatprep.subr.mxu0 0.0
        %351 = vmatpush1.msra.mxu0 0.0
        %352 = vmatprep.subr.mxu0 0.0
        %353 = vmatpush1.msra.mxu0 0.0
        %354 = vmatprep.subr.mxu0 0.0
        %355 = vmatpush1.msra.mxu0 0.0
        %356 = vmatprep.subr.mxu0 0.0
        %357 = vmatpush1.msra.mxu0 0.0
        %358 = vmatprep.subr.mxu0 0.0
        %359 = vmatpush1.msra.mxu0 0.0
        %360 = vmatprep.subr.mxu0 0.0
        %361 = vmatpush1.msra.mxu0 0.0
        %362 = vmatprep.subr.mxu0 0.0
        %363 = vmatpush1.msra.mxu0 0.0
        %364 = vmatprep.subr.mxu0 0.0
        %365 = vmatpush1.msra.mxu0 0.0
        %366 = vmatprep.subr.mxu0 0.0
        %367 = vmatpush1.msra.mxu0 0.0
        %368 = vmatprep.subr.mxu0 0.0
        %369 = vmatpush1.msra.mxu0 0.0
        %370 = vmatprep.subr.mxu0 0.0
        %371 = vmatpush1.msra.mxu0 0.0
        %372 = vmatprep.subr.mxu0 0.0
        %373 = vmatpush1.msra.mxu0 0.0
        %374 = vmatprep.mubr.f32.mxu0 0.0
        %375 = vmatmul.mubr.f32.gmra.mrb[0].mxu0 %v174
        %v376 = vpop.f32.mrb[0].mxu0
        %v377 = vadd.f32 0.0, %v376
        %v378 = vpop.f32.mrb[0].mxu0
        %v379 = vadd.f32 0.0, %v378
        %380 = vdwg.mxu0
        %381 = vst [vmem:[%s173] sm:$0xff] %v306
        %382 = vst [vmem:[%s173 + $0x8] sm:$0xff] %v308
        %383 = vst [vmem:[%s173 + $0x10] sm:$0xff] %v377
        %384 = vst [vmem:[%s173 + $0x18] sm:$0xff] %v379
        %s385 = sand.u32 %s75, 1
        %s386 = scalar_lea.sflag [#allocation4], %s385
        %s387 = sand.u32 %s75, 1
        %s388 = smul.addr %s387, 32
        %s389 = scalar_lea.vmem [#allocation7], %s388
        // Predicated region
        $region37: #{tpu_custom_call.1} parent=27 // pred_check
          %p390 = pneg %p85
        $region38: #{tpu_custom_call.1} parent=27 // pred_check_branch
          %392 = sbr.rel (%p390) target = $region40
        $region39: #{tpu_custom_call.1} parent=27 // pred_region
          %s394 = ssub.s32 512, 512
          %395 = vsyncadd %s386, %s394
          %s396 = smul.addr %s20, 4
          %s397 = smul.addr %s396, 128
          %s398 = scalar_lea.hbm %s2, %s397
          %s400 = sshll.u32 %s389, 4
          %s401 = int_to_ptr.vmem [resolvable:$true] %s400
          %403 = dma.vmem_to_hbm [thread:$0]  %s401, 512, %s398, %s386
        $region40: #{tpu_custom_call.1} parent=27 // pred_fallthru
          _
      $region28: #{tpu_custom_call.1} parent=5 // pred_fallthru
        _
      %p404 = scmp.le.s32.totalorder 2, %s15
      // Predicated region
      $region41: #{tpu_custom_call.1} parent=5 // pred_check
        %p405 = pneg %p404
      $region42: #{tpu_custom_call.1} parent=5 // pred_check_branch
        %407 = sbr.rel (%p405) target = $region44
      $region43: #{tpu_custom_call.1} parent=5 // pred_region
        %s408 = ssub.s32 %s15, 2
        // Predicated region
        $region45: #{tpu_custom_call.1} parent=43 // pred_check
          %p409 = pneg %p91
        $region46: #{tpu_custom_call.1} parent=43 // pred_check_branch
          %411 = sbr.rel (%p409) target = $region48
        $region47: #{tpu_custom_call.1} parent=43 // pred_region
          %s412 = sand.u32 %s76, 1
          %s413 = scalar_lea.sflag [#allocation4], %s412
          %s414 = sand.u32 %s76, 1
          %s415 = smul.addr %s414, 32
          %s416 = scalar_lea.vmem [#allocation7], %s415
          %417 = dma.done %s413, 512
        $region48: #{tpu_custom_call.1} parent=43 // pred_fallthru
          _
      $region44: #{tpu_custom_call.1} parent=5 // pred_fallthru
        _
    $region6: #{tpu_custom_call.1} parent=1 // loop_footer
      %s19 = sadd.s32 1, %s15
    $region7: #{tpu_custom_call.1} parent=1 // loop_footer_branch
      %14 = sbr.rel target = $region3
    $region8: #{tpu_custom_call.1} parent=1 // loop_exit
      _
    %418 = vsyncpa [#allocation3], 1
    %s419 = scalar_lea.sflag [#allocation3], 1
    %420 = vsyncpa %s419, 1
    %421 = vsyncpa [#allocation6], 1
    %s422 = scalar_lea.sflag [#allocation6], 1
    %423 = vsyncpa %s422, 1
    %424 = vsyncpa [#allocation4], 1
    %s425 = scalar_lea.sflag [#allocation4], 1
    %426 = vsyncpa %s425, 1

</llo_original>
